<compile_context>
chip_gen: v7x
topology: tpu7x:2x2x1
jax: 0.10.0
libtpu: 0.0.40
codegen_flags: <defaults>
</compile_context>

<pallas_src>
import functools

import jax
import jax.numpy as jnp
from jax.experimental import pallas as pl
from jax.experimental.pallas import tpu as pltpu


# --------------------------------------------------------------------------
# Kernels
# --------------------------------------------------------------------------
def _encoder_fused_kernel(adj_ref, dinv_ref, x_ref,
                          w1_ref, b1_ref,
                          w2_ref, b2_ref,
                          wcat_ref, bcat_ref,
                          out_ref):
    """Whole 3-layer forward, everything VMEM-resident (small-graph regime)."""
    adj = adj_ref[...]            # [Np, Np] bf16, unnormalized A + I (0/1 entries)
    dinv = dinv_ref[...]          # [Np, 1]  f32,  D^-1/2 (0 for padded nodes)

    def propagate(v):
        # A_hat @ v == dinv * (A @ (dinv * v)); bf16 MXU feed, f32 accumulate.
        vs = (dinv * v).astype(jnp.bfloat16)
        return dinv * jnp.dot(adj, vs, preferred_element_type=jnp.float32)

    # Layer 1 (reordered by associativity, in_size < mid_size):
    #   relu((A_hat @ x) @ W1 + b1)
    h = propagate(x_ref[...])
    h = jnp.maximum(
        jnp.dot(h.astype(jnp.bfloat16), w1_ref[...],
                preferred_element_type=jnp.float32) + b1_ref[...], 0.0)

    # Layer 2: relu(A_hat @ (h @ W2) + b2)
    h = jnp.dot(h.astype(jnp.bfloat16), w2_ref[...],
                preferred_element_type=jnp.float32)
    h = jnp.maximum(propagate(h) + b2_ref[...], 0.0)

    # Fused heads: A_hat @ (h @ [Wmu | Wls]) + [bmu | bls] -> one 128-lane slab
    z = jnp.dot(h.astype(jnp.bfloat16), wcat_ref[...],
                preferred_element_type=jnp.float32)
    out_ref[...] = propagate(z) + bcat_ref[...]


def _gcn_layer_kernel(adj_ref, dinv_ref, feats_ref, w_ref, b_ref, out_ref,
                      *, apply_relu):
    """One GCN layer over a row panel of the adjacency (streamed-adj path).

    adj_ref:   [tm, Np]  bf16  row panel of (A + I)
    dinv_ref:  [tm, 1]   f32   D^-1/2 for the panel's rows
    feats_ref: [Np, Fin] bf16  pre-scaled features (dinv * feat), full-resident
    w_ref:     [Fin, Fout] bf16,  b_ref: [1, Fout] f32
    out = act(dinv_rows * (A_rows @ feats) @ W + b)   (== act(A_hat@(feat@W)+b))
    """
    p = jnp.dot(adj_ref[...], feats_ref[...],
                preferred_element_type=jnp.float32)          # [tm, Fin]
    p = dinv_ref[...] * p
    h = jnp.dot(p.astype(jnp.bfloat16), w_ref[...],
                preferred_element_type=jnp.float32) + b_ref[...]
    if apply_relu:
        h = jnp.maximum(h, 0.0)
    out_ref[...] = h


# --------------------------------------------------------------------------
# Host-side helpers
# --------------------------------------------------------------------------
_LANE = 128


def _rpad(v, m=_LANE):
    return -(-v // m) * m


def _vmem_capacity_bytes():
    try:
        return int(pltpu.get_tpu_info().vmem_capacity_bytes)
    except Exception:
        return 64 << 20   # conservative (v7x per-TC) fallback


def _pad2(w, rows, cols, dtype=jnp.float32):
    out = jnp.zeros((rows, cols), jnp.float32)
    out = out.at[: w.shape[0], : w.shape[1]].set(w.astype(jnp.float32))
    return out.astype(dtype)


def build_graph(edge_index, n, n_p=None):
    """Build (A + I) in bf16 plus the D^-1/2 vector. Cache this per graph."""
    if n_p is None:
        n_p = _rpad(n)
    a = jnp.zeros((n_p, n_p), jnp.bfloat16)
    a = a.at[edge_index[0], edge_index[1]].set(1.0)   # 0/1 exact in bf16
    idx = jnp.arange(n)
    a = a.at[idx, idx].set(1.0)                       # self loops, real nodes only
    deg = jnp.sum(a, axis=1, dtype=jnp.float32)       # f32 accumulation
    dinv = jnp.where(deg > 0, jax.lax.rsqrt(deg), 0.0).reshape(n_p, 1)
    return a, dinv


def _gcn_layer_tiled(a_bf16, dinv, feat, w, b, *, apply_relu, vmem_cap):
    """One pallas_call per layer, adjacency streamed in row panels."""
    n_p = a_bf16.shape[0]
    fin, fout = w.shape
    feats = (dinv * feat.astype(jnp.float32)).astype(jnp.bfloat16)  # pre-scaled
    tm = 256 if n_p % 256 == 0 else 128
    grid = (n_p // tm,)

    step_bytes = (2 * tm * n_p * 2                # adj panel, double-buffered
                  + n_p * fin * 2 + fin * fout * 2 + fout * 4
                  + 2 * tm * fout * 4 + 2 * tm * 4)
    vmem_limit = int(min(max(step_bytes + (8 << 20), 32 << 20),
                         int(0.9 * vmem_cap)))
    cost = pl.CostEstimate(
        flops=int(2 * n_p * n_p * fin + 2 * n_p * fin * fout),
        transcendentals=0,
        bytes_accessed=int(n_p * n_p * 2 + n_p * (fin * 2 + fout * 4)))

    return pl.pallas_call(
        functools.partial(_gcn_layer_kernel, apply_relu=apply_relu),
        out_shape=jax.ShapeDtypeStruct((n_p, fout), jnp.float32),
        grid=grid,
        in_specs=[pl.BlockSpec((tm, n_p), lambda i: (i, 0)),
                  pl.BlockSpec((tm, 1), lambda i: (i, 0)),
                  pl.BlockSpec((n_p, fin), lambda i: (0, 0)),
                  pl.BlockSpec((fin, fout), lambda i: (0, 0)),
                  pl.BlockSpec((1, fout), lambda i: (0, 0))],
        out_specs=pl.BlockSpec((tm, fout), lambda i: (i, 0)),
        compiler_params=pltpu.CompilerParams(
            dimension_semantics=("parallel",),     # v7x: shards panels over TCs
            vmem_limit_bytes=vmem_limit),
        cost_estimate=cost,
    )(a_bf16, dinv, feats, w, b)


# --------------------------------------------------------------------------
# Public forward pass
# --------------------------------------------------------------------------
def cmap_encoder3(x, edge_index, params, *, graph=None, mode="auto"):
    """Forward pass of CMAPEncoder3.

    x:          [N, in_size] float32 node features
    edge_index: [2, E] int32 COO edge list (as in PyG GCNConv)
    params:     dict with w1,b1,w2,b2,wmu,bmu,wls,bls ([in,out] weights, [out] biases)
    graph:      optional cached (a_bf16, dinv) from build_graph() for this graph
    mode:       "auto" | "fused" | "tiled"
    returns:    (mu [N, out_size], logstd [N, out_size])
    """
    n, in_size = x.shape
    mid_size = params["w1"].shape[1]
    out_size = params["wmu"].shape[1]

    in_p, mid_p = _rpad(in_size), _rpad(mid_size)
    cat_p = _rpad(2 * out_size)          # both heads packed into one lane block

    if graph is None:
        graph = build_graph(edge_index, n)
    a_bf16, dinv = graph
    n_p = a_bf16.shape[0]

    # ---- zero-pad / cast weights, biases, features (bf16 MXU feed) ----
    x_pad = _pad2(x, n_p, in_p, jnp.bfloat16)
    w1 = _pad2(params["w1"], in_p, mid_p, jnp.bfloat16)
    b1 = _pad2(params["b1"].reshape(1, -1), 1, mid_p, jnp.float32)
    w2 = _pad2(params["w2"], mid_p, mid_p, jnp.bfloat16)
    b2 = _pad2(params["b2"].reshape(1, -1), 1, mid_p, jnp.float32)

    wcat = jnp.zeros((mid_p, cat_p), jnp.float32)
    wcat = wcat.at[:mid_size, :out_size].set(params["wmu"])
    wcat = wcat.at[:mid_size, out_size:2 * out_size].set(params["wls"])
    wcat = wcat.astype(jnp.bfloat16)
    bcat = jnp.zeros((1, cat_p), jnp.float32)
    bcat = bcat.at[0, :out_size].set(params["bmu"])
    bcat = bcat.at[0, out_size:2 * out_size].set(params["bls"])

    vmem_cap = _vmem_capacity_bytes()

    operands = (a_bf16, dinv, x_pad, w1, b1, w2, b2, wcat, bcat)
    in_bytes = sum(int(o.size) * o.dtype.itemsize for o in operands)
    out_bytes = n_p * cat_p * 4
    scratch_est = 6 * n_p * max(in_p, mid_p, cat_p) * 4      # h/z/vs intermediates
    resident = in_bytes + out_bytes + scratch_est

    if mode == "auto":
        mode = "fused" if resident + (4 << 20) <= vmem_cap // 2 else "tiled"

    if mode == "fused":
        # Single grid-less call, single-buffered operands (no 2x pipelining factor).
        vmem_limit = int(min(max(resident + (4 << 20), 32 << 20),
                             int(0.9 * vmem_cap)))
        flops = int(2 * n_p * n_p * (in_p + mid_p + cat_p)
                    + 2 * n_p * (in_p * mid_p + mid_p * mid_p + mid_p * cat_p))
        cost = pl.CostEstimate(flops=flops, transcendentals=0,
                               bytes_accessed=in_bytes + out_bytes)
        vmem = pl.BlockSpec(memory_space=pltpu.MemorySpace.VMEM)
        out = pl.pallas_call(
            _encoder_fused_kernel,
            out_shape=jax.ShapeDtypeStruct((n_p, cat_p), jnp.float32),
            in_specs=[vmem] * len(operands),
            out_specs=vmem,
            compiler_params=pltpu.CompilerParams(vmem_limit_bytes=vmem_limit),
            cost_estimate=cost,
        )(*operands)
    else:
        # Streamed-adjacency path: one pallas_call per layer, adjacency row panels
        # pipelined over a parallel grid axis (also uses both TCs on v7x).
        h = _gcn_layer_tiled(a_bf16, dinv, x_pad, w1, b1,
                             apply_relu=True, vmem_cap=vmem_cap)
        h = _gcn_layer_tiled(a_bf16, dinv, h, w2, b2,
                             apply_relu=True, vmem_cap=vmem_cap)
        out = _gcn_layer_tiled(a_bf16, dinv, h, wcat, bcat,
                               apply_relu=False, vmem_cap=vmem_cap)

    mu = out[:n, :out_size]
    logstd = out[:n, out_size:2 * out_size]
    return mu, logstd


# --------------------------------------------------------------------------
# Params init + pure-JAX reference
# --------------------------------------------------------------------------
def init_params(key, in_size, mid_size, out_size):
    ks = jax.random.split(key, 4)

    def glorot(k, fin, fout):
        scale = jnp.sqrt(6.0 / (fin + fout))
        return jax.random.uniform(k, (fin, fout), jnp.float32, -scale, scale)

    return {
        "w1": glorot(ks[0], in_size, mid_size),  "b1": jnp.zeros((mid_size,), jnp.float32),
        "w2": glorot(ks[1], mid_size, mid_size), "b2": jnp.zeros((mid_size,), jnp.float32),
        "wmu": glorot(ks[2], mid_size, out_size), "bmu": jnp.zeros((out_size,), jnp.float32),
        "wls": glorot(ks[3], mid_size, out_size), "bls": jnp.zeros((out_size,), jnp.float32),
    }


def _reference(x, edge_index, params):
    """Pure-JAX f32 reference (matches the PyG GCNConv math)."""
    n = x.shape[0]
    a = jnp.zeros((n, n), jnp.float32)
    a = a.at[edge_index[0], edge_index[1]].set(1.0)
    a = a.at[jnp.arange(n), jnp.arange(n)].set(1.0)
    deg = a.sum(axis=1)
    dinv = jnp.where(deg > 0, 1.0 / jnp.sqrt(deg), 0.0)
    ah = a * dinv[:, None] * dinv[None, :]
    h = jnp.maximum(ah @ (x @ params["w1"]) + params["b1"], 0.0)
    h = jnp.maximum(ah @ (h @ params["w2"]) + params["b2"], 0.0)
    mu = ah @ (h @ params["wmu"]) + params["bmu"]
    ls = ah @ (h @ params["wls"]) + params["bls"]
    return mu, ls


# --------------------------------------------------------------------------
# Smoke test
# --------------------------------------------------------------------------
if __name__ == "__main__":
    IN_SIZE, MID_SIZE, OUT_SIZE = 8, 32, 16

    key = jax.random.PRNGKey(0)
    kx1, kx2, kp = jax.random.split(key, 3)
    params = init_params(kp, IN_SIZE, MID_SIZE, OUT_SIZE)

    def ring_edges(n):
        src = jnp.arange(n, dtype=jnp.int32)
        dst = (src + 1) % n
        return jnp.stack([jnp.concatenate([src, dst]),
                          jnp.concatenate([dst, src])])   # undirected, [2, 2N]

    # --- small graph: fused, fully VMEM-resident path (auto) ---
    N1 = 16
    x1 = jax.random.normal(kx1, (N1, IN_SIZE), jnp.float32)
    ei1 = ring_edges(N1)
    mu1, ls1 = cmap_encoder3(x1, ei1, params)
    jax.block_until_ready((mu1, ls1))
    assert mu1.shape == (N1, OUT_SIZE) and ls1.shape == (N1, OUT_SIZE)
    assert bool(jnp.all(jnp.isfinite(mu1))) and bool(jnp.all(jnp.isfinite(ls1)))
    mu1_ref, ls1_ref = _reference(x1, ei1, params)
    assert bool(jnp.allclose(mu1, mu1_ref, atol=1e-1, rtol=1e-1))
    assert bool(jnp.allclose(ls1, ls1_ref, atol=1e-1, rtol=1e-1))

    # --- larger graph: row-tiled streamed-adjacency path (forced) ---
    N2 = 300
    x2 = jax.random.normal(kx2, (N2, IN_SIZE), jnp.float32)
    ei2 = ring_edges(N2)
    mu2, ls2 = cmap_encoder3(x2, ei2, params, mode="tiled")
    jax.block_until_ready((mu2, ls2))
    assert mu2.shape == (N2, OUT_SIZE) and ls2.shape == (N2, OUT_SIZE)
    assert bool(jnp.all(jnp.isfinite(mu2))) and bool(jnp.all(jnp.isfinite(ls2)))
    mu2_ref, ls2_ref = _reference(x2, ei2, params)
    assert bool(jnp.allclose(mu2, mu2_ref, atol=1e-1, rtol=1e-1))
    assert bool(jnp.allclose(ls2, ls2_ref, atol=1e-1, rtol=1e-1))

    print("KERNEL_OK")
</pallas_src>

<mosaic_0001>
module attributes {stable_mosaic.version = 11 : i64} {
  func.func @_encoder_fused_kernel(%arg0: memref<128x128xbf16, #tpu.memory_space<vmem>>, %arg1: memref<128x1xf32, #tpu.memory_space<vmem>>, %arg2: memref<128x128xbf16, #tpu.memory_space<vmem>>, %arg3: memref<128x128xbf16, #tpu.memory_space<vmem>>, %arg4: memref<1x128xf32, #tpu.memory_space<vmem>>, %arg5: memref<128x128xbf16, #tpu.memory_space<vmem>>, %arg6: memref<1x128xf32, #tpu.memory_space<vmem>>, %arg7: memref<128x128xbf16, #tpu.memory_space<vmem>>, %arg8: memref<1x128xf32, #tpu.memory_space<vmem>>, %arg9: memref<128x128xf32, #tpu.memory_space<vmem>>) attributes {dimension_semantics = [], scalar_prefetch = 0 : i64, scratch_operands = 0 : i64, tpu.core_type = #tpu.core_type<tc>} {
    %c0 = arith.constant 0 : index
    %c0_0 = arith.constant 0 : index
    %0 = vector.load %arg0[%c0, %c0_0] : memref<128x128xbf16, #tpu.memory_space<vmem>>, vector<128x128xbf16>
    %c0_1 = arith.constant 0 : index
    %c0_2 = arith.constant 0 : index
    %1 = vector.load %arg1[%c0_1, %c0_2] : memref<128x1xf32, #tpu.memory_space<vmem>>, vector<128x1xf32>
    %c0_3 = arith.constant 0 : index
    %c0_4 = arith.constant 0 : index
    %2 = vector.load %arg2[%c0_3, %c0_4] : memref<128x128xbf16, #tpu.memory_space<vmem>>, vector<128x128xbf16>
    %3 = arith.extf %2 : vector<128x128xbf16> to vector<128x128xf32>
    %4 = vector.broadcast %1 : vector<128x1xf32> to vector<128x128xf32>
    %5 = arith.mulf %4, %3 : vector<128x128xf32>
    %6 = arith.truncf %5 : vector<128x128xf32> to vector<128x128xbf16>
    %cst = arith.constant dense<0.000000e+00> : vector<128x128xf32>
    %7 = tpu.matmul %0, %6, %cst {dimension_numbers = #tpu.dot_dimension_numbers<[1], [0], [0], [1], [0, 0, 1, 1], [], []>} : vector<128x128xbf16>, vector<128x128xbf16>, vector<128x128xf32> -> vector<128x128xf32>
    %8 = vector.broadcast %1 : vector<128x1xf32> to vector<128x128xf32>
    %9 = arith.mulf %8, %7 : vector<128x128xf32>
    %10 = arith.truncf %9 : vector<128x128xf32> to vector<128x128xbf16>
    %c0_5 = arith.constant 0 : index
    %c0_6 = arith.constant 0 : index
    %11 = vector.load %arg3[%c0_5, %c0_6] : memref<128x128xbf16, #tpu.memory_space<vmem>>, vector<128x128xbf16>
    %cst_7 = arith.constant dense<0.000000e+00> : vector<128x128xf32>
    %12 = tpu.matmul %10, %11, %cst_7 {dimension_numbers = #tpu.dot_dimension_numbers<[1], [0], [0], [1], [0, 0, 1, 1], [], []>} : vector<128x128xbf16>, vector<128x128xbf16>, vector<128x128xf32> -> vector<128x128xf32>
    %c0_8 = arith.constant 0 : index
    %c0_9 = arith.constant 0 : index
    %13 = vector.load %arg4[%c0_8, %c0_9] : memref<1x128xf32, #tpu.memory_space<vmem>>, vector<1x128xf32>
    %14 = vector.broadcast %13 : vector<1x128xf32> to vector<128x128xf32>
    %15 = arith.addf %12, %14 : vector<128x128xf32>
    %cst_10 = arith.constant 0.000000e+00 : f32
    %16 = vector.broadcast %cst_10 : f32 to vector<128x128xf32>
    %17 = arith.maximumf %15, %16 : vector<128x128xf32>
    %18 = arith.truncf %17 : vector<128x128xf32> to vector<128x128xbf16>
    %c0_11 = arith.constant 0 : index
    %c0_12 = arith.constant 0 : index
    %19 = vector.load %arg5[%c0_11, %c0_12] : memref<128x128xbf16, #tpu.memory_space<vmem>>, vector<128x128xbf16>
    %cst_13 = arith.constant dense<0.000000e+00> : vector<128x128xf32>
    %20 = tpu.matmul %18, %19, %cst_13 {dimension_numbers = #tpu.dot_dimension_numbers<[1], [0], [0], [1], [0, 0, 1, 1], [], []>} : vector<128x128xbf16>, vector<128x128xbf16>, vector<128x128xf32> -> vector<128x128xf32>
    %21 = vector.broadcast %1 : vector<128x1xf32> to vector<128x128xf32>
    %22 = arith.mulf %21, %20 : vector<128x128xf32>
    %23 = arith.truncf %22 : vector<128x128xf32> to vector<128x128xbf16>
    %cst_14 = arith.constant dense<0.000000e+00> : vector<128x128xf32>
    %24 = tpu.matmul %0, %23, %cst_14 {dimension_numbers = #tpu.dot_dimension_numbers<[1], [0], [0], [1], [0, 0, 1, 1], [], []>} : vector<128x128xbf16>, vector<128x128xbf16>, vector<128x128xf32> -> vector<128x128xf32>
    %25 = vector.broadcast %1 : vector<128x1xf32> to vector<128x128xf32>
    %26 = arith.mulf %25, %24 : vector<128x128xf32>
    %c0_15 = arith.constant 0 : index
    %c0_16 = arith.constant 0 : index
    %27 = vector.load %arg6[%c0_15, %c0_16] : memref<1x128xf32, #tpu.memory_space<vmem>>, vector<1x128xf32>
    %28 = vector.broadcast %27 : vector<1x128xf32> to vector<128x128xf32>
    %29 = arith.addf %26, %28 : vector<128x128xf32>
    %cst_17 = arith.constant 0.000000e+00 : f32
    %30 = vector.broadcast %cst_17 : f32 to vector<128x128xf32>
    %31 = arith.maximumf %29, %30 : vector<128x128xf32>
    %32 = arith.truncf %31 : vector<128x128xf32> to vector<128x128xbf16>
    %c0_18 = arith.constant 0 : index
    %c0_19 = arith.constant 0 : index
    %33 = vector.load %arg7[%c0_18, %c0_19] : memref<128x128xbf16, #tpu.memory_space<vmem>>, vector<128x128xbf16>
    %cst_20 = arith.constant dense<0.000000e+00> : vector<128x128xf32>
    %34 = tpu.matmul %32, %33, %cst_20 {dimension_numbers = #tpu.dot_dimension_numbers<[1], [0], [0], [1], [0, 0, 1, 1], [], []>} : vector<128x128xbf16>, vector<128x128xbf16>, vector<128x128xf32> -> vector<128x128xf32>
    %35 = vector.broadcast %1 : vector<128x1xf32> to vector<128x128xf32>
    %36 = arith.mulf %35, %34 : vector<128x128xf32>
    %37 = arith.truncf %36 : vector<128x128xf32> to vector<128x128xbf16>
    %cst_21 = arith.constant dense<0.000000e+00> : vector<128x128xf32>
    %38 = tpu.matmul %0, %37, %cst_21 {dimension_numbers = #tpu.dot_dimension_numbers<[1], [0], [0], [1], [0, 0, 1, 1], [], []>} : vector<128x128xbf16>, vector<128x128xbf16>, vector<128x128xf32> -> vector<128x128xf32>
    %39 = vector.broadcast %1 : vector<128x1xf32> to vector<128x128xf32>
    %40 = arith.mulf %39, %38 : vector<128x128xf32>
    %c0_22 = arith.constant 0 : index
    %c0_23 = arith.constant 0 : index
    %41 = vector.load %arg8[%c0_22, %c0_23] : memref<1x128xf32, #tpu.memory_space<vmem>>, vector<1x128xf32>
    %42 = vector.broadcast %41 : vector<1x128xf32> to vector<128x128xf32>
    %43 = arith.addf %40, %42 : vector<128x128xf32>
    %c0_24 = arith.constant 0 : index
    %c0_25 = arith.constant 0 : index
    %44 = vector.load %arg9[%c0_24, %c0_25] : memref<128x128xf32, #tpu.memory_space<vmem>>, vector<128x128xf32>
    tpu.vector_store %arg9[%c0_24, %c0_25], %43 {strides = array<i32>} : memref<128x128xf32, #tpu.memory_space<vmem>>, vector<128x128xf32>,
    return
  }
}

</mosaic_0001>

<llo_original>
// kernel: tpu_custom_call.1
$region0: #{tpu_custom_call.1}
  #allocation0 [shape = 'u32[]', space=smem, size = 0x4, offset = 0x4, fixed_abs, tag = 'smem constant byte address 0x4 - core index']
  #allocation1 [shape = 'u32[144,128]{1,0:T(1,128)}', space=vmem, size = 0x12000, scoped, tag = 'internal scratch']
  %s0 = inlined_call_operand.vmem [shape: bf16[128,128], index: 0, kind: input, shape index: {}]
  %s1 = inlined_call_operand.vmem [shape: f32[128,1], index: 1, kind: input, shape index: {}]
  %s2 = inlined_call_operand.vmem [shape: bf16[128,128], index: 2, kind: input, shape index: {}]
  %s3 = inlined_call_operand.hbm [shape: bf16[128,128], index: 3, kind: input, shape index: {}]
  %s4 = inlined_call_operand.vmem [shape: f32[1,128], index: 4, kind: input, shape index: {}]
  %s5 = inlined_call_operand.hbm [shape: bf16[128,128], index: 5, kind: input, shape index: {}]
  %s6 = inlined_call_operand.vmem [shape: f32[1,128], index: 6, kind: input, shape index: {}]
  %s7 = inlined_call_operand.hbm [shape: bf16[128,128], index: 7, kind: input, shape index: {}]
  %s8 = inlined_call_operand.vmem [shape: f32[1,128], index: 8, kind: input, shape index: {}]
  %s9 = inlined_call_operand.hbm [shape: f32[128,128], index: 9, kind: output, shape index: {}]
  %s10 = sld [smem:[#allocation0]]
  $region58: #{tpu_custom_call.1} parent=0
    _
  %s12 = ssub.s32 1, %s10
  %s13 = scalar_select 0, %s12, %s10
  $region1: #{tpu_custom_call.1} parent=0
    #allocation2 [shape = 'u8[32768]{0}', space=vmem, size = 0x8000, scoped, tag = 'input window, operand 3, single buffered']
    #allocation3 [shape = 's32[1]{0}', space=sflag, size = 0x4, scoped, tag = 'scoped memory for tpu_custom_call.1']
    #allocation4 [shape = 's32[1]{0}', space=sflag, size = 0x4, scoped, tag = 'scoped memory for tpu_custom_call.1']
    #allocation5 [shape = 'u8[32768]{0}', space=vmem, size = 0x8000, scoped, tag = 'input window, operand 5, single buffered']
    #allocation6 [shape = 's32[1]{0}', space=sflag, size = 0x4, scoped, tag = 'scoped memory for tpu_custom_call.1']
    #allocation7 [shape = 'u8[32768]{0}', space=vmem, size = 0x8000, scoped, tag = 'input window, operand 7, single buffered']
    #allocation8 [shape = 'u8[65536]{0}', space=vmem, size = 0x10000, scoped, tag = 'output window, operand 0, single buffered']
    %14 = vsyncpa [#allocation3], 0
    %15 = vsyncpa [#allocation6], 0
    %16 = vsyncpa [#allocation4], 0
    // Predicated region
    $region2: #{tpu_custom_call.1} parent=1 // pred_check
      _
    $region3: #{tpu_custom_call.1} parent=1 // pred_check_branch
      %18 = sbr.rel (0) target = $region5
    $region4: #{tpu_custom_call.1} parent=1 // pred_region
      _
    $region5: #{tpu_custom_call.1} parent=1 // pred_fallthru
      _
    // Predicated region
    $region6: #{tpu_custom_call.1} parent=1 // pred_check
      _
    $region7: #{tpu_custom_call.1} parent=1 // pred_check_branch
      %20 = sbr.rel (0) target = $region9
    $region8: #{tpu_custom_call.1} parent=1 // pred_region
      _
    $region9: #{tpu_custom_call.1} parent=1 // pred_fallthru
      _
    // Predicated region
    $region10: #{tpu_custom_call.1} parent=1 // pred_check
      _
    $region11: #{tpu_custom_call.1} parent=1 // pred_check_branch
      %22 = sbr.rel (0) target = $region13
    $region12: #{tpu_custom_call.1} parent=1 // pred_region
      _
    $region13: #{tpu_custom_call.1} parent=1 // pred_fallthru
      _
    // Predicated region
    $region14: #{tpu_custom_call.1} parent=1 // pred_check
      _
    $region15: #{tpu_custom_call.1} parent=1 // pred_check_branch
      %24 = sbr.rel (0) target = $region17
    $region16: #{tpu_custom_call.1} parent=1 // pred_region
      %s26 = ssub.s32 1024, 1024
      %27 = vsyncadd [#allocation3], %s26
      %s28 = sshll.u32 [#allocation2], 4
      %s29 = int_to_ptr.vmem [resolvable:$true] %s28
      %34 = dma.hbm_to_vmem [thread:$0]  %s3, 1024, %s29, [#allocation3], 64, 64, 4
    $region17: #{tpu_custom_call.1} parent=1 // pred_fallthru
      _
    // Predicated region
    $region18: #{tpu_custom_call.1} parent=1 // pred_check
      _
    $region19: #{tpu_custom_call.1} parent=1 // pred_check_branch
      %36 = sbr.rel (0) target = $region21
    $region20: #{tpu_custom_call.1} parent=1 // pred_region
      _
    $region21: #{tpu_custom_call.1} parent=1 // pred_fallthru
      _
    // Predicated region
    $region22: #{tpu_custom_call.1} parent=1 // pred_check
      _
    $region23: #{tpu_custom_call.1} parent=1 // pred_check_branch
      %38 = sbr.rel (0) target = $region25
    $region24: #{tpu_custom_call.1} parent=1 // pred_region
      %s40 = ssub.s32 1024, 1024
      %41 = vsyncadd [#allocation6], %s40
      %s42 = sshll.u32 [#allocation5], 4
      %s43 = int_to_ptr.vmem [resolvable:$true] %s42
      %48 = dma.hbm_to_vmem [thread:$0]  %s5, 1024, %s43, [#allocation6], 64, 64, 4
    $region25: #{tpu_custom_call.1} parent=1 // pred_fallthru
      _
    // Predicated region
    $region26: #{tpu_custom_call.1} parent=1 // pred_check
      _
    $region27: #{tpu_custom_call.1} parent=1 // pred_check_branch
      %50 = sbr.rel (0) target = $region29
    $region28: #{tpu_custom_call.1} parent=1 // pred_region
      _
    $region29: #{tpu_custom_call.1} parent=1 // pred_fallthru
      _
    // Predicated region
    $region30: #{tpu_custom_call.1} parent=1 // pred_check
      _
    $region31: #{tpu_custom_call.1} parent=1 // pred_check_branch
      %52 = sbr.rel (0) target = $region33
    $region32: #{tpu_custom_call.1} parent=1 // pred_region
      %s54 = ssub.s32 1024, 1024
      %55 = vsyncadd [#allocation6], %s54
      %s56 = sshll.u32 [#allocation7], 4
      %s57 = int_to_ptr.vmem [resolvable:$true] %s56
      %62 = dma.hbm_to_vmem [thread:$0]  %s7, 1024, %s57, [#allocation6], 64, 64, 4
    $region33: #{tpu_custom_call.1} parent=1 // pred_fallthru
      _
    // Predicated region
    $region34: #{tpu_custom_call.1} parent=1 // pred_check
      _
    $region35: #{tpu_custom_call.1} parent=1 // pred_check_branch
      %64 = sbr.rel (0) target = $region37
    $region36: #{tpu_custom_call.1} parent=1 // pred_region
      _
    $region37: #{tpu_custom_call.1} parent=1 // pred_fallthru
      _
    // Predicated region
    $region38: #{tpu_custom_call.1} parent=1 // pred_check
      _
    $region39: #{tpu_custom_call.1} parent=1 // pred_check_branch
      %66 = sbr.rel (0) target = $region41
    $region40: #{tpu_custom_call.1} parent=1 // pred_region
      %67 = dma.done [#allocation3], 1024
    $region41: #{tpu_custom_call.1} parent=1 // pred_fallthru
      _
    // Predicated region
    $region42: #{tpu_custom_call.1} parent=1 // pred_check
      _
    $region43: #{tpu_custom_call.1} parent=1 // pred_check_branch
      %69 = sbr.rel (0) target = $region45
    $region44: #{tpu_custom_call.1} parent=1 // pred_region
      %70 = dma.done [#allocation6], 1024
    $region45: #{tpu_custom_call.1} parent=1 // pred_fallthru
      _
    // Predicated region
    $region46: #{tpu_custom_call.1} parent=1 // pred_check
      _
    $region47: #{tpu_custom_call.1} parent=1 // pred_check_branch
      %72 = sbr.rel (0) target = $region49
    $region48: #{tpu_custom_call.1} parent=1 // pred_region
      %73 = dma.done [#allocation6], 1024
    $region49: #{tpu_custom_call.1} parent=1 // pred_fallthru
      _
    %v75 = vld [vmem:[%s0] sm:$0xf]
    %v76 = vld [vmem:[%s0 + $0x4] sm:$0xf]
    %v77 = vld [vmem:[%s0 + $0x8] sm:$0xf]
    %v78 = vld [vmem:[%s0 + $0xc] sm:$0xf]
    %v79 = vld [vmem:[%s0 + $0x10] sm:$0xf]
    %v80 = vld [vmem:[%s0 + $0x14] sm:$0xf]
    %v81 = vld [vmem:[%s0 + $0x18] sm:$0xf]
    %v82 = vld [vmem:[%s0 + $0x1c] sm:$0xf]
    %v83 = vld [vmem:[%s0 + $0x20] sm:$0xf]
    %v84 = vld [vmem:[%s0 + $0x24] sm:$0xf]
    %v85 = vld [vmem:[%s0 + $0x28] sm:$0xf]
    %v86 = vld [vmem:[%s0 + $0x2c] sm:$0xf]
    %v87 = vld [vmem:[%s0 + $0x30] sm:$0xf]
    %v88 = vld [vmem:[%s0 + $0x34] sm:$0xf]
    %v89 = vld [vmem:[%s0 + $0x38] sm:$0xf]
    %v90 = vld [vmem:[%s0 + $0x3c] sm:$0xf]
    %v91 = vld [vmem:[%s1] sm:$0xff]
    %v92 = vld [vmem:[%s1 + $0x8] sm:$0xff]
    %v93 = vld [vmem:[%s1 + $0x10] sm:$0xff]
    %v94 = vld [vmem:[%s1 + $0x18] sm:$0xff]
    %v95 = vld [vmem:[%s1 + $0x20] sm:$0xff]
    %v96 = vld [vmem:[%s1 + $0x28] sm:$0xff]
    %v97 = vld [vmem:[%s1 + $0x30] sm:$0xff]
    %v98 = vld [vmem:[%s1 + $0x38] sm:$0xff]
    %v99 = vld [vmem:[%s1 + $0x40] sm:$0xff]
    %v100 = vld [vmem:[%s1 + $0x48] sm:$0xff]
    %v101 = vld [vmem:[%s1 + $0x50] sm:$0xff]
    %v102 = vld [vmem:[%s1 + $0x58] sm:$0xff]
    %v103 = vld [vmem:[%s1 + $0x60] sm:$0xff]
    %v104 = vld [vmem:[%s1 + $0x68] sm:$0xff]
    %v105 = vld [vmem:[%s1 + $0x70] sm:$0xff]
    %v106 = vld [vmem:[%s1 + $0x78] sm:$0xff]
    %v107 = vld [vmem:[%s2] sm:$0xf]
    %v108 = vld [vmem:[%s2 + $0x4] sm:$0xf]
    %v109 = vld [vmem:[%s2 + $0x8] sm:$0xf]
    %v110 = vld [vmem:[%s2 + $0xc] sm:$0xf]
    %v111 = vld [vmem:[%s2 + $0x10] sm:$0xf]
    %v112 = vld [vmem:[%s2 + $0x14] sm:$0xf]
    %v113 = vld [vmem:[%s2 + $0x18] sm:$0xf]
    %v114 = vld [vmem:[%s2 + $0x1c] sm:$0xf]
    %v115 = vld [vmem:[%s2 + $0x20] sm:$0xf]
    %v116 = vld [vmem:[%s2 + $0x24] sm:$0xf]
    %v117 = vld [vmem:[%s2 + $0x28] sm:$0xf]
    %v118 = vld [vmem:[%s2 + $0x2c] sm:$0xf]
    %v119 = vld [vmem:[%s2 + $0x30] sm:$0xf]
    %v120 = vld [vmem:[%s2 + $0x34] sm:$0xf]
    %v121 = vld [vmem:[%s2 + $0x38] sm:$0xf]
    %v122 = vld [vmem:[%s2 + $0x3c] sm:$0xf]
    %v123 = vunpack.c.l.bf16 %v107
    %v124 = vunpack.c.l.bf16 %v108
    %v125 = vunpack.c.l.bf16 %v109
    %v126 = vunpack.c.l.bf16 %v110
    %v127 = vunpack.c.l.bf16 %v111
    %v128 = vunpack.c.l.bf16 %v112
    %v129 = vunpack.c.l.bf16 %v113
    %v130 = vunpack.c.l.bf16 %v114
    %v131 = vunpack.c.l.bf16 %v115
    %v132 = vunpack.c.l.bf16 %v116
    %v133 = vunpack.c.l.bf16 %v117
    %v134 = vunpack.c.l.bf16 %v118
    %v135 = vunpack.c.l.bf16 %v119
    %v136 = vunpack.c.l.bf16 %v120
    %v137 = vunpack.c.l.bf16 %v121
    %v138 = vunpack.c.l.bf16 %v122
    %140 = vset.pattern.permute.xlu0 0
    %141 = vperm.xlu0 %140, %v91
    %v142 = vpop.permute.xlu0 %141
    %145 = vset.pattern.permute.xlu0 0
    %146 = vperm.xlu0 %145, %v92
    %v147 = vpop.permute.xlu0 %146
    %150 = vset.pattern.permute.xlu0 0
    %151 = vperm.xlu0 %150, %v93
    %v152 = vpop.permute.xlu0 %151
    %155 = vset.pattern.permute.xlu0 0
    %156 = vperm.xlu0 %155, %v94
    %v157 = vpop.permute.xlu0 %156
    %160 = vset.pattern.permute.xlu0 0
    %161 = vperm.xlu0 %160, %v95
    %v162 = vpop.permute.xlu0 %161
    %165 = vset.pattern.permute.xlu0 0
    %166 = vperm.xlu0 %165, %v96
    %v167 = vpop.permute.xlu0 %166
    %170 = vset.pattern.permute.xlu0 0
    %171 = vperm.xlu0 %170, %v97
    %v172 = vpop.permute.xlu0 %171
    %175 = vset.pattern.permute.xlu0 0
    %176 = vperm.xlu0 %175, %v98
    %v177 = vpop.permute.xlu0 %176
    %180 = vset.pattern.permute.xlu0 0
    %181 = vperm.xlu0 %180, %v99
    %v182 = vpop.permute.xlu0 %181
    %185 = vset.pattern.permute.xlu0 0
    %186 = vperm.xlu0 %185, %v100
    %v187 = vpop.permute.xlu0 %186
    %190 = vset.pattern.permute.xlu0 0
    %191 = vperm.xlu0 %190, %v101
    %v192 = vpop.permute.xlu0 %191
    %195 = vset.pattern.permute.xlu0 0
    %196 = vperm.xlu0 %195, %v102
    %v197 = vpop.permute.xlu0 %196
    %200 = vset.pattern.permute.xlu0 0
    %201 = vperm.xlu0 %200, %v103
    %v202 = vpop.permute.xlu0 %201
    %205 = vset.pattern.permute.xlu0 0
    %206 = vperm.xlu0 %205, %v104
    %v207 = vpop.permute.xlu0 %206
    %210 = vset.pattern.permute.xlu0 0
    %211 = vperm.xlu0 %210, %v105
    %v212 = vpop.permute.xlu0 %211
    %215 = vset.pattern.permute.xlu0 0
    %216 = vperm.xlu0 %215, %v106
    %v217 = vpop.permute.xlu0 %216
    %v219 = vmul.f32 %v142, %v123
    %v220 = vmul.f32 %v147, %v124
    %v221 = vmul.f32 %v152, %v125
    %v222 = vmul.f32 %v157, %v126
    %v223 = vmul.f32 %v162, %v127
    %v224 = vmul.f32 %v167, %v128
    %v225 = vmul.f32 %v172, %v129
    %v226 = vmul.f32 %v177, %v130
    %v227 = vmul.f32 %v182, %v131
    %v228 = vmul.f32 %v187, %v132
    %v229 = vmul.f32 %v192, %v133
    %v230 = vmul.f32 %v197, %v134
    %v231 = vmul.f32 %v202, %v135
    %v232 = vmul.f32 %v207, %v136
    %v233 = vmul.f32 %v212, %v137
    %v234 = vmul.f32 %v217, %v138
    %v235 = vpack.c.bf16 %v220, %v219
    %v236 = vpack.c.bf16 %v222, %v221
    %v237 = vpack.c.bf16 %v224, %v223
    %v238 = vpack.c.bf16 %v226, %v225
    %v239 = vpack.c.bf16 %v228, %v227
    %v240 = vpack.c.bf16 %v230, %v229
    %v241 = vpack.c.bf16 %v232, %v231
    %v242 = vpack.c.bf16 %v234, %v233
    %v259 = vunpack.c.l.b16 %v75
    %v260 = vunpack.c.l.b16 %v76
    %v261 = vunpack.c.l.b16 %v77
    %v262 = vunpack.c.l.b16 %v78
    %v263 = vunpack.c.l.b16 %v79
    %v264 = vunpack.c.l.b16 %v80
    %v265 = vunpack.c.l.b16 %v81
    %v266 = vunpack.c.l.b16 %v82
    %v267 = vunpack.c.l.b16 %v83
    %v268 = vunpack.c.l.b16 %v84
    %v269 = vunpack.c.l.b16 %v85
    %v270 = vunpack.c.l.b16 %v86
    %v271 = vunpack.c.l.b16 %v87
    %v272 = vunpack.c.l.b16 %v88
    %v273 = vunpack.c.l.b16 %v89
    %v274 = vunpack.c.l.b16 %v90
    %v275 = vpack.c.b16 %v260, %v259
    %v276 = vpack.c.b16 %v262, %v261
    %v277 = vpack.c.b16 %v264, %v263
    %v278 = vpack.c.b16 %v266, %v265
    %v279 = vpack.c.b16 %v268, %v267
    %v280 = vpack.c.b16 %v270, %v269
    %v281 = vpack.c.b16 %v272, %v271
    %v282 = vpack.c.b16 %v274, %v273
    %291 = vmatprep.subr.bf16.mxu0 0
    %292 = vmatpush1.bf16.msra.mxu0 %v235
    %293 = vmatprep.subr.bf16.mxu0 0
    %294 = vmatpush1.bf16.msra.mxu0 %v236
    %295 = vmatprep.subr.bf16.mxu0 0
    %296 = vmatpush1.bf16.msra.mxu0 %v237
    %297 = vmatprep.subr.bf16.mxu0 0
    %298 = vmatpush1.bf16.msra.mxu0 %v238
    %299 = vmatprep.subr.bf16.mxu0 0
    %300 = vmatpush1.bf16.msra.mxu0 %v239
    %301 = vmatprep.subr.bf16.mxu0 0
    %302 = vmatpush1.bf16.msra.mxu0 %v240
    %303 = vmatprep.subr.bf16.mxu0 0
    %304 = vmatpush1.bf16.msra.mxu0 %v241
    %305 = vmatprep.subr.bf16.mxu0 0
    %306 = vmatpush1.bf16.msra.mxu0 %v242
    %307 = vmatprep.subr.bf16.mxu0 0
    %308 = vmatpush1.bf16.msra.mxu0 0
    %309 = vmatprep.subr.bf16.mxu0 0
    %310 = vmatpush1.bf16.msra.mxu0 0
    %311 = vmatprep.subr.bf16.mxu0 0
    %312 = vmatpush1.bf16.msra.mxu0 0
    %313 = vmatprep.subr.bf16.mxu0 0
    %314 = vmatpush1.bf16.msra.mxu0 0
    %315 = vmatprep.subr.bf16.mxu0 0
    %316 = vmatpush1.bf16.msra.mxu0 0
    %317 = vmatprep.subr.bf16.mxu0 0
    %318 = vmatpush1.bf16.msra.mxu0 0
    %319 = vmatprep.subr.bf16.mxu0 0
    %320 = vmatpush1.bf16.msra.mxu0 0
    %321 = vmatprep.subr.bf16.mxu0 0
    %322 = vmatpush1.bf16.msra.mxu0 0
    %323 = vmatprep.mubr.bf16.mxu0 0
    %324 = vmatmul.mubr.bf16.gmra.mrb[0].mxu0 %v275
    %v325 = vpop.f32.mrb[0].mxu0
    %v326 = vadd.f32 0.0, %v325
    %v327 = vpop.f32.mrb[0].mxu0
    %v328 = vpop.f32.mrb[0].mxu0
    %v329 = vadd.f32 0.0, %v328
    %v330 = vpop.f32.mrb[0].mxu0
    %331 = vmatprep.mubr.bf16.mxu0 0
    %332 = vmatmul.mubr.bf16.gmra.mrb[0].mxu0 %v276
    %v333 = vpop.f32.mrb[0].mxu0
    %v334 = vadd.f32 0.0, %v333
    %v335 = vpop.f32.mrb[0].mxu0
    %v336 = vpop.f32.mrb[0].mxu0
    %v337 = vadd.f32 0.0, %v336
    %v338 = vpop.f32.mrb[0].mxu0
    %339 = vmatprep.mubr.bf16.mxu0 0
    %340 = vmatmul.mubr.bf16.gmra.mrb[0].mxu0 %v277
    %v341 = vpop.f32.mrb[0].mxu0
    %v342 = vadd.f32 0.0, %v341
    %v343 = vpop.f32.mrb[0].mxu0
    %v344 = vpop.f32.mrb[0].mxu0
    %v345 = vadd.f32 0.0, %v344
    %v346 = vpop.f32.mrb[0].mxu0
    %347 = vmatprep.mubr.bf16.mxu0 0
    %348 = vmatmul.mubr.bf16.gmra.mrb[0].mxu0 %v278
    %v349 = vpop.f32.mrb[0].mxu0
    %v350 = vadd.f32 0.0, %v349
    %v351 = vpop.f32.mrb[0].mxu0
    %v352 = vpop.f32.mrb[0].mxu0
    %v353 = vadd.f32 0.0, %v352
    %v354 = vpop.f32.mrb[0].mxu0
    %355 = vmatprep.mubr.bf16.mxu0 0
    %356 = vmatmul.mubr.bf16.gmra.mrb[0].mxu0 %v279
    %v357 = vpop.f32.mrb[0].mxu0
    %v358 = vadd.f32 0.0, %v357
    %v359 = vpop.f32.mrb[0].mxu0
    %v360 = vpop.f32.mrb[0].mxu0
    %v361 = vadd.f32 0.0, %v360
    %v362 = vpop.f32.mrb[0].mxu0
    %363 = vmatprep.mubr.bf16.mxu0 0
    %364 = vmatmul.mubr.bf16.gmra.mrb[0].mxu0 %v280
    %v365 = vpop.f32.mrb[0].mxu0
    %v366 = vadd.f32 0.0, %v365
    %v367 = vpop.f32.mrb[0].mxu0
    %v368 = vpop.f32.mrb[0].mxu0
    %v369 = vadd.f32 0.0, %v368
    %v370 = vpop.f32.mrb[0].mxu0
    %371 = vmatprep.mubr.bf16.mxu0 0
    %372 = vmatmul.mubr.bf16.gmra.mrb[0].mxu0 %v281
    %v373 = vpop.f32.mrb[0].mxu0
    %v374 = vadd.f32 0.0, %v373
    %v375 = vpop.f32.mrb[0].mxu0
    %v376 = vpop.f32.mrb[0].mxu0
    %v377 = vadd.f32 0.0, %v376
    %v378 = vpop.f32.mrb[0].mxu0
    %379 = vmatprep.mubr.bf16.mxu0 0
    %380 = vmatmul.mubr.bf16.gmra.mrb[0].mxu0 %v282
    %v381 = vpop.f32.mrb[0].mxu0
    %v382 = vadd.f32 0.0, %v381
    %v383 = vpop.f32.mrb[0].mxu0
    %v384 = vpop.f32.mrb[0].mxu0
    %v385 = vadd.f32 0.0, %v384
    %v386 = vpop.f32.mrb[0].mxu0
    %387 = vdwg.mxu0
    %v388 = vmul.f32 %v142, %v326
    %v389 = vmul.f32 %v147, %v329
    %v390 = vmul.f32 %v152, %v334
    %v391 = vmul.f32 %v157, %v337
    %v392 = vmul.f32 %v162, %v342
    %v393 = vmul.f32 %v167, %v345
    %v394 = vmul.f32 %v172, %v350
    %v395 = vmul.f32 %v177, %v353
    %v396 = vmul.f32 %v182, %v358
    %v397 = vmul.f32 %v187, %v361
    %v398 = vmul.f32 %v192, %v366
    %v399 = vmul.f32 %v197, %v369
    %v400 = vmul.f32 %v202, %v374
    %v401 = vmul.f32 %v207, %v377
    %v402 = vmul.f32 %v212, %v382
    %v403 = vmul.f32 %v217, %v385
    %v404 = vpack.c.bf16 %v389, %v388
    %v405 = vpack.c.bf16 %v391, %v390
    %v406 = vpack.c.bf16 %v393, %v392
    %v407 = vpack.c.bf16 %v395, %v394
    %v408 = vpack.c.bf16 %v397, %v396
    %v409 = vpack.c.bf16 %v399, %v398
    %v410 = vpack.c.bf16 %v401, %v400
    %v411 = vpack.c.bf16 %v403, %v402
    %v412 = vld [vmem:[#allocation2] sm:$0xf]
    %v413 = vld [vmem:[#allocation2 + $0x4] sm:$0xf]
    %v414 = vld [vmem:[#allocation2 + $0x8] sm:$0xf]
    %v415 = vld [vmem:[#allocation2 + $0xc] sm:$0xf]
    %v416 = vld [vmem:[#allocation2 + $0x10] sm:$0xf]
    %v417 = vld [vmem:[#allocation2 + $0x14] sm:$0xf]
    %v418 = vld [vmem:[#allocation2 + $0x18] sm:$0xf]
    %v419 = vld [vmem:[#allocation2 + $0x1c] sm:$0xf]
    %v420 = vld [vmem:[#allocation2 + $0x20] sm:$0xf]
    %v421 = vld [vmem:[#allocation2 + $0x24] sm:$0xf]
    %v422 = vld [vmem:[#allocation2 + $0x28] sm:$0xf]
    %v423 = vld [vmem:[#allocation2 + $0x2c] sm:$0xf]
    %v424 = vld [vmem:[#allocation2 + $0x30] sm:$0xf]
    %v425 = vld [vmem:[#allocation2 + $0x34] sm:$0xf]
    %v426 = vld [vmem:[#allocation2 + $0x38] sm:$0xf]
    %v427 = vld [vmem:[#allocation2 + $0x3c] sm:$0xf]
    %v428 = vld [vmem:[%s4] sm:$0x1]
    %v430 = vlaneseq
    %v431 = vshrl.u32 %v430, 7
    %v432 = vsub.s32 0, %v431
    %v433 = vrot.slane %v428, %v432
    %v451 = vunpack.c.l.b16 %v412
    %v452 = vunpack.c.l.b16 %v413
    %v453 = vunpack.c.l.b16 %v414
    %v454 = vunpack.c.l.b16 %v415
    %v455 = vunpack.c.l.b16 %v416
    %v456 = vunpack.c.l.b16 %v417
    %v457 = vunpack.c.l.b16 %v418
    %v458 = vunpack.c.l.b16 %v419
    %v459 = vunpack.c.l.b16 %v420
    %v460 = vunpack.c.l.b16 %v421
    %v461 = vunpack.c.l.b16 %v422
    %v462 = vunpack.c.l.b16 %v423
    %v463 = vunpack.c.l.b16 %v424
    %v464 = vunpack.c.l.b16 %v425
    %v465 = vunpack.c.l.b16 %v426
    %v466 = vunpack.c.l.b16 %v427
    %v467 = vpack.c.b16 %v452, %v451
    %v468 = vpack.c.b16 %v454, %v453
    %v469 = vpack.c.b16 %v456, %v455
    %v470 = vpack.c.b16 %v458, %v457
    %v471 = vpack.c.b16 %v460, %v459
    %v472 = vpack.c.b16 %v462, %v461
    %v473 = vpack.c.b16 %v464, %v463
    %v474 = vpack.c.b16 %v466, %v465
    %483 = vmatprep.subr.bf16.mxu0 0
    %484 = vmatpush1.bf16.msra.mxu0 %v467
    %485 = vmatprep.subr.bf16.mxu0 0
    %486 = vmatpush1.bf16.msra.mxu0 %v468
    %487 = vmatprep.subr.bf16.mxu0 0
    %488 = vmatpush1.bf16.msra.mxu0 %v469
    %489 = vmatprep.subr.bf16.mxu0 0
    %490 = vmatpush1.bf16.msra.mxu0 %v470
    %491 = vmatprep.subr.bf16.mxu0 0
    %492 = vmatpush1.bf16.msra.mxu0 %v471
    %493 = vmatprep.subr.bf16.mxu0 0
    %494 = vmatpush1.bf16.msra.mxu0 %v472
    %495 = vmatprep.subr.bf16.mxu0 0
    %496 = vmatpush1.bf16.msra.mxu0 %v473
    %497 = vmatprep.subr.bf16.mxu0 0
    %498 = vmatpush1.bf16.msra.mxu0 %v474
    %499 = vmatprep.subr.bf16.mxu0 0
    %500 = vmatpush1.bf16.msra.mxu0 0
    %501 = vmatprep.subr.bf16.mxu0 0
    %502 = vmatpush1.bf16.msra.mxu0 0
    %503 = vmatprep.subr.bf16.mxu0 0
    %504 = vmatpush1.bf16.msra.mxu0 0
    %505 = vmatprep.subr.bf16.mxu0 0
    %506 = vmatpush1.bf16.msra.mxu0 0
    %507 = vmatprep.subr.bf16.mxu0 0
    %508 = vmatpush1.bf16.msra.mxu0 0
    %509 = vmatprep.subr.bf16.mxu0 0
    %510 = vmatpush1.bf16.msra.mxu0 0
    %511 = vmatprep.subr.bf16.mxu0 0
    %512 = vmatpush1.bf16.msra.mxu0 0
    %513 = vmatprep.subr.bf16.mxu0 0
    %514 = vmatpush1.bf16.msra.mxu0 0
    %515 = vmatprep.mubr.bf16.mxu0 0
    %516 = vmatmul.mubr.bf16.gmra.mrb[0].mxu0 %v404
    %v517 = vpop.f32.mrb[0].mxu0
    %v518 = vadd.f32 %v433, %v517
    %v519 = vpop.f32.mrb[0].mxu0
    %v520 = vpop.f32.mrb[0].mxu0
    %v521 = vadd.f32 %v433, %v520
    %v522 = vpop.f32.mrb[0].mxu0
    %523 = vmatprep.mubr.bf16.mxu0 0
    %524 = vmatmul.mubr.bf16.gmra.mrb[0].mxu0 %v405
    %v525 = vpop.f32.mrb[0].mxu0
    %v526 = vadd.f32 %v433, %v525
    %v527 = vpop.f32.mrb[0].mxu0
    %v528 = vpop.f32.mrb[0].mxu0
    %v529 = vadd.f32 %v433, %v528
    %v530 = vpop.f32.mrb[0].mxu0
    %531 = vmatprep.mubr.bf16.mxu0 0
    %532 = vmatmul.mubr.bf16.gmra.mrb[0].mxu0 %v406
    %v533 = vpop.f32.mrb[0].mxu0
    %v534 = vadd.f32 %v433, %v533
    %v535 = vpop.f32.mrb[0].mxu0
    %v536 = vpop.f32.mrb[0].mxu0
    %v537 = vadd.f32 %v433, %v536
    %v538 = vpop.f32.mrb[0].mxu0
    %539 = vmatprep.mubr.bf16.mxu0 0
    %540 = vmatmul.mubr.bf16.gmra.mrb[0].mxu0 %v407
    %v541 = vpop.f32.mrb[0].mxu0
    %v542 = vadd.f32 %v433, %v541
    %v543 = vpop.f32.mrb[0].mxu0
    %v544 = vpop.f32.mrb[0].mxu0
    %v545 = vadd.f32 %v433, %v544
    %v546 = vpop.f32.mrb[0].mxu0
    %547 = vmatprep.mubr.bf16.mxu0 0
    %548 = vmatmul.mubr.bf16.gmra.mrb[0].mxu0 %v408
    %v549 = vpop.f32.mrb[0].mxu0
    %v550 = vadd.f32 %v433, %v549
    %v551 = vpop.f32.mrb[0].mxu0
    %v552 = vpop.f32.mrb[0].mxu0
    %v553 = vadd.f32 %v433, %v552
    %v554 = vpop.f32.mrb[0].mxu0
    %555 = vmatprep.mubr.bf16.mxu0 0
    %556 = vmatmul.mubr.bf16.gmra.mrb[0].mxu0 %v409
    %v557 = vpop.f32.mrb[0].mxu0
    %v558 = vadd.f32 %v433, %v557
    %v559 = vpop.f32.mrb[0].mxu0
    %v560 = vpop.f32.mrb[0].mxu0
    %v561 = vadd.f32 %v433, %v560
    %v562 = vpop.f32.mrb[0].mxu0
    %563 = vmatprep.mubr.bf16.mxu0 0
    %564 = vmatmul.mubr.bf16.gmra.mrb[0].mxu0 %v410
    %v565 = vpop.f32.mrb[0].mxu0
    %v566 = vadd.f32 %v433, %v565
    %v567 = vpop.f32.mrb[0].mxu0
    %v568 = vpop.f32.mrb[0].mxu0
    %v569 = vadd.f32 %v433, %v568
    %v570 = vpop.f32.mrb[0].mxu0
    %571 = vmatprep.mubr.bf16.mxu0 0
    %572 = vmatmul.mubr.bf16.gmra.mrb[0].mxu0 %v411
    %v573 = vpop.f32.mrb[0].mxu0
    %v574 = vadd.f32 %v433, %v573
    %v575 = vpop.f32.mrb[0].mxu0
    %v576 = vpop.f32.mrb[0].mxu0
    %v577 = vadd.f32 %v433, %v576
    %v578 = vpop.f32.mrb[0].mxu0
    %579 = vdwg.mxu0
    %v580 = vmax.f32 %v518, 0.0
    %v581 = vmax.f32 %v521, 0.0
    %v582 = vmax.f32 %v526, 0.0
    %v583 = vmax.f32 %v529, 0.0
    %v584 = vmax.f32 %v534, 0.0
    %v585 = vmax.f32 %v537, 0.0
    %v586 = vmax.f32 %v542, 0.0
    %v587 = vmax.f32 %v545, 0.0
    %v588 = vmax.f32 %v550, 0.0
    %v589 = vmax.f32 %v553, 0.0
    %v590 = vmax.f32 %v558, 0.0
    %v591 = vmax.f32 %v561, 0.0
    %v592 = vmax.f32 %v566, 0.0
    %v593 = vmax.f32 %v569, 0.0
    %v594 = vmax.f32 %v574, 0.0
    %v595 = vmax.f32 %v577, 0.0
    %v596 = vpack.c.bf16 %v581, %v580
    %v597 = vpack.c.bf16 %v583, %v582
    %v598 = vpack.c.bf16 %v585, %v584
    %v599 = vpack.c.bf16 %v587, %v586
    %v600 = vpack.c.bf16 %v589, %v588
    %v601 = vpack.c.bf16 %v591, %v590
    %v602 = vpack.c.bf16 %v593, %v592
    %v603 = vpack.c.bf16 %v595, %v594
    %v604 = vld [vmem:[#allocation5] sm:$0xf]
    %v605 = vld [vmem:[#allocation5 + $0x4] sm:$0xf]
    %v606 = vld [vmem:[#allocation5 + $0x8] sm:$0xf]
    %v607 = vld [vmem:[#allocation5 + $0xc] sm:$0xf]
    %v608 = vld [vmem:[#allocation5 + $0x10] sm:$0xf]
    %v609 = vld [vmem:[#allocation5 + $0x14] sm:$0xf]
    %v610 = vld [vmem:[#allocation5 + $0x18] sm:$0xf]
    %v611 = vld [vmem:[#allocation5 + $0x1c] sm:$0xf]
    %v612 = vld [vmem:[#allocation5 + $0x20] sm:$0xf]
    %v613 = vld [vmem:[#allocation5 + $0x24] sm:$0xf]
    %v614 = vld [vmem:[#allocation5 + $0x28] sm:$0xf]
    %v615 = vld [vmem:[#allocation5 + $0x2c] sm:$0xf]
    %v616 = vld [vmem:[#allocation5 + $0x30] sm:$0xf]
    %v617 = vld [vmem:[#allocation5 + $0x34] sm:$0xf]
    %v618 = vld [vmem:[#allocation5 + $0x38] sm:$0xf]
    %v619 = vld [vmem:[#allocation5 + $0x3c] sm:$0xf]
    %v636 = vunpack.c.l.b16 %v604
    %v637 = vunpack.c.l.b16 %v605
    %v638 = vunpack.c.l.b16 %v606
    %v639 = vunpack.c.l.b16 %v607
    %v640 = vunpack.c.l.b16 %v608
    %v641 = vunpack.c.l.b16 %v609
    %v642 = vunpack.c.l.b16 %v610
    %v643 = vunpack.c.l.b16 %v611
    %v644 = vunpack.c.l.b16 %v612
    %v645 = vunpack.c.l.b16 %v613
    %v646 = vunpack.c.l.b16 %v614
    %v647 = vunpack.c.l.b16 %v615
    %v648 = vunpack.c.l.b16 %v616
    %v649 = vunpack.c.l.b16 %v617
    %v650 = vunpack.c.l.b16 %v618
    %v651 = vunpack.c.l.b16 %v619
    %v652 = vpack.c.b16 %v637, %v636
    %v653 = vpack.c.b16 %v639, %v638
    %v654 = vpack.c.b16 %v641, %v640
    %v655 = vpack.c.b16 %v643, %v642
    %v656 = vpack.c.b16 %v645, %v644
    %v657 = vpack.c.b16 %v647, %v646
    %v658 = vpack.c.b16 %v649, %v648
    %v659 = vpack.c.b16 %v651, %v650
    %668 = vmatprep.subr.bf16.mxu0 0
    %669 = vmatpush1.bf16.msra.mxu0 %v652
    %670 = vmatprep.subr.bf16.mxu0 0
    %671 = vmatpush1.bf16.msra.mxu0 %v653
    %672 = vmatprep.subr.bf16.mxu0 0
    %673 = vmatpush1.bf16.msra.mxu0 %v654
    %674 = vmatprep.subr.bf16.mxu0 0
    %675 = vmatpush1.bf16.msra.mxu0 %v655
    %676 = vmatprep.subr.bf16.mxu0 0
    %677 = vmatpush1.bf16.msra.mxu0 %v656
    %678 = vmatprep.subr.bf16.mxu0 0
    %679 = vmatpush1.bf16.msra.mxu0 %v657
    %680 = vmatprep.subr.bf16.mxu0 0
    %681 = vmatpush1.bf16.msra.mxu0 %v658
    %682 = vmatprep.subr.bf16.mxu0 0
    %683 = vmatpush1.bf16.msra.mxu0 %v659
    %684 = vmatprep.subr.bf16.mxu0 0
    %685 = vmatpush1.bf16.msra.mxu0 0
    %686 = vmatprep.subr.bf16.mxu0 0
    %687 = vmatpush1.bf16.msra.mxu0 0
    %688 = vmatprep.subr.bf16.mxu0 0
    %689 = vmatpush1.bf16.msra.mxu0 0
    %690 = vmatprep.subr.bf16.mxu0 0
    %691 = vmatpush1.bf16.msra.mxu0 0
    %692 = vmatprep.subr.bf16.mxu0 0
    %693 = vmatpush1.bf16.msra.mxu0 0
    %694 = vmatprep.subr.bf16.mxu0 0
    %695 = vmatpush1.bf16.msra.mxu0 0
    %696 = vmatprep.subr.bf16.mxu0 0
    %697 = vmatpush1.bf16.msra.mxu0 0
    %698 = vmatprep.subr.bf16.mxu0 0
    %699 = vmatpush1.bf16.msra.mxu0 0
    %700 = vmatprep.mubr.bf16.mxu0 0
    %701 = vmatmul.mubr.bf16.gmra.mrb[0].mxu0 %v596
    %v702 = vpop.f32.mrb[0].mxu0
    %v703 = vadd.f32 0.0, %v702
    %v704 = vpop.f32.mrb[0].mxu0
    %v705 = vpop.f32.mrb[0].mxu0
    %v706 = vadd.f32 0.0, %v705
    %v707 = vpop.f32.mrb[0].mxu0
    %708 = vmatprep.mubr.bf16.mxu0 0
    %709 = vmatmul.mubr.bf16.gmra.mrb[0].mxu0 %v597
    %v710 = vpop.f32.mrb[0].mxu0
    %v711 = vadd.f32 0.0, %v710
    %v712 = vpop.f32.mrb[0].mxu0
    %v713 = vpop.f32.mrb[0].mxu0
    %v714 = vadd.f32 0.0, %v713
    %v715 = vpop.f32.mrb[0].mxu0
    %716 = vmatprep.mubr.bf16.mxu0 0
    %717 = vmatmul.mubr.bf16.gmra.mrb[0].mxu0 %v598
    %v718 = vpop.f32.mrb[0].mxu0
    %v719 = vadd.f32 0.0, %v718
    %v720 = vpop.f32.mrb[0].mxu0
    %v721 = vpop.f32.mrb[0].mxu0
    %v722 = vadd.f32 0.0, %v721
    %v723 = vpop.f32.mrb[0].mxu0
    %724 = vmatprep.mubr.bf16.mxu0 0
    %725 = vmatmul.mubr.bf16.gmra.mrb[0].mxu0 %v599
    %v726 = vpop.f32.mrb[0].mxu0
    %v727 = vadd.f32 0.0, %v726
    %v728 = vpop.f32.mrb[0].mxu0
    %v729 = vpop.f32.mrb[0].mxu0
    %v730 = vadd.f32 0.0, %v729
    %v731 = vpop.f32.mrb[0].mxu0
    %732 = vmatprep.mubr.bf16.mxu0 0
    %733 = vmatmul.mubr.bf16.gmra.mrb[0].mxu0 %v600
    %v734 = vpop.f32.mrb[0].mxu0
    %v735 = vadd.f32 0.0, %v734
    %v736 = vpop.f32.mrb[0].mxu0
    %v737 = vpop.f32.mrb[0].mxu0
    %v738 = vadd.f32 0.0, %v737
    %v739 = vpop.f32.mrb[0].mxu0
    %740 = vmatprep.mubr.bf16.mxu0 0
    %741 = vmatmul.mubr.bf16.gmra.mrb[0].mxu0 %v601
    %v742 = vpop.f32.mrb[0].mxu0
    %v743 = vadd.f32 0.0, %v742
    %v744 = vpop.f32.mrb[0].mxu0
    %v745 = vpop.f32.mrb[0].mxu0
    %v746 = vadd.f32 0.0, %v745
    %v747 = vpop.f32.mrb[0].mxu0
    %748 = vmatprep.mubr.bf16.mxu0 0
    %749 = vmatmul.mubr.bf16.gmra.mrb[0].mxu0 %v602
    %v750 = vpop.f32.mrb[0].mxu0
    %v751 = vadd.f32 0.0, %v750
    %v752 = vpop.f32.mrb[0].mxu0
    %v753 = vpop.f32.mrb[0].mxu0
    %v754 = vadd.f32 0.0, %v753
    %v755 = vpop.f32.mrb[0].mxu0
    %756 = vmatprep.mubr.bf16.mxu0 0
    %757 = vmatmul.mubr.bf16.gmra.mrb[0].mxu0 %v603
    %v758 = vpop.f32.mrb[0].mxu0
    %v759 = vadd.f32 0.0, %v758
    %v760 = vpop.f32.mrb[0].mxu0
    %v761 = vpop.f32.mrb[0].mxu0
    %v762 = vadd.f32 0.0, %v761
    %v763 = vpop.f32.mrb[0].mxu0
    %764 = vdwg.mxu0
    %v765 = vmul.f32 %v142, %v703
    %v766 = vmul.f32 %v147, %v706
    %v767 = vmul.f32 %v152, %v711
    %v768 = vmul.f32 %v157, %v714
    %v769 = vmul.f32 %v162, %v719
    %v770 = vmul.f32 %v167, %v722
    %v771 = vmul.f32 %v172, %v727
    %v772 = vmul.f32 %v177, %v730
    %v773 = vmul.f32 %v182, %v735
    %v774 = vmul.f32 %v187, %v738
    %v775 = vmul.f32 %v192, %v743
    %v776 = vmul.f32 %v197, %v746
    %v777 = vmul.f32 %v202, %v751
    %v778 = vmul.f32 %v207, %v754
    %v779 = vmul.f32 %v212, %v759
    %v780 = vmul.f32 %v217, %v762
    %v781 = vpack.c.bf16 %v766, %v765
    %v782 = vpack.c.bf16 %v768, %v767
    %v783 = vpack.c.bf16 %v770, %v769
    %v784 = vpack.c.bf16 %v772, %v771
    %v785 = vpack.c.bf16 %v774, %v773
    %v786 = vpack.c.bf16 %v776, %v775
    %v787 = vpack.c.bf16 %v778, %v777
    %v788 = vpack.c.bf16 %v780, %v779
    %789 = vmatprep.subr.bf16.mxu0 0
    %790 = vmatpush1.bf16.msra.mxu0 %v781
    %791 = vmatprep.subr.bf16.mxu0 0
    %792 = vmatpush1.bf16.msra.mxu0 %v782
    %793 = vmatprep.subr.bf16.mxu0 0
    %794 = vmatpush1.bf16.msra.mxu0 %v783
    %795 = vmatprep.subr.bf16.mxu0 0
    %796 = vmatpush1.bf16.msra.mxu0 %v784
    %797 = vmatprep.subr.bf16.mxu0 0
    %798 = vmatpush1.bf16.msra.mxu0 %v785
    %799 = vmatprep.subr.bf16.mxu0 0
    %800 = vmatpush1.bf16.msra.mxu0 %v786
    %801 = vmatprep.subr.bf16.mxu0 0
    %802 = vmatpush1.bf16.msra.mxu0 %v787
    %803 = vmatprep.subr.bf16.mxu0 0
    %804 = vmatpush1.bf16.msra.mxu0 %v788
    %805 = vmatprep.subr.bf16.mxu0 0
    %806 = vmatpush1.bf16.msra.mxu0 0
    %807 = vmatprep.subr.bf16.mxu0 0
    %808 = vmatpush1.bf16.msra.mxu0 0
    %809 = vmatprep.subr.bf16.mxu0 0
    %810 = vmatpush1.bf16.msra.mxu0 0
    %811 = vmatprep.subr.bf16.mxu0 0
    %812 = vmatpush1.bf16.msra.mxu0 0
    %813 = vmatprep.subr.bf16.mxu0 0
    %814 = vmatpush1.bf16.msra.mxu0 0
    %815 = vmatprep.subr.bf16.mxu0 0
    %816 = vmatpush1.bf16.msra.mxu0 0
    %817 = vmatprep.subr.bf16.mxu0 0
    %818 = vmatpush1.bf16.msra.mxu0 0
    %819 = vmatprep.subr.bf16.mxu0 0
    %820 = vmatpush1.bf16.msra.mxu0 0
    %821 = vmatprep.mubr.bf16.mxu0 0
    %822 = vmatmul.mubr.bf16.gmra.mrb[0].mxu0 %v275
    %v823 = vpop.f32.mrb[0].mxu0
    %v824 = vadd.f32 0.0, %v823
    %v825 = vpop.f32.mrb[0].mxu0
    %v826 = vpop.f32.mrb[0].mxu0
    %v827 = vadd.f32 0.0, %v826
    %v828 = vpop.f32.mrb[0].mxu0
    %829 = vmatprep.mubr.bf16.mxu0 0
    %830 = vmatmul.mubr.bf16.gmra.mrb[0].mxu0 %v276
    %v831 = vpop.f32.mrb[0].mxu0
    %v832 = vadd.f32 0.0, %v831
    %v833 = vpop.f32.mrb[0].mxu0
    %v834 = vpop.f32.mrb[0].mxu0
    %v835 = vadd.f32 0.0, %v834
    %v836 = vpop.f32.mrb[0].mxu0
    %837 = vmatprep.mubr.bf16.mxu0 0
    %838 = vmatmul.mubr.bf16.gmra.mrb[0].mxu0 %v277
    %v839 = vpop.f32.mrb[0].mxu0
    %v840 = vadd.f32 0.0, %v839
    %v841 = vpop.f32.mrb[0].mxu0
    %v842 = vpop.f32.mrb[0].mxu0
    %v843 = vadd.f32 0.0, %v842
    %v844 = vpop.f32.mrb[0].mxu0
    %845 = vmatprep.mubr.bf16.mxu0 0
    %846 = vmatmul.mubr.bf16.gmra.mrb[0].mxu0 %v278
    %v847 = vpop.f32.mrb[0].mxu0
    %v848 = vadd.f32 0.0, %v847
    %v849 = vpop.f32.mrb[0].mxu0
    %v850 = vpop.f32.mrb[0].mxu0
    %v851 = vadd.f32 0.0, %v850
    %v852 = vpop.f32.mrb[0].mxu0
    %853 = vmatprep.mubr.bf16.mxu0 0
    %854 = vmatmul.mubr.bf16.gmra.mrb[0].mxu0 %v279
    %v855 = vpop.f32.mrb[0].mxu0
    %v856 = vadd.f32 0.0, %v855
    %v857 = vpop.f32.mrb[0].mxu0
    %v858 = vpop.f32.mrb[0].mxu0
    %v859 = vadd.f32 0.0, %v858
    %v860 = vpop.f32.mrb[0].mxu0
    %861 = vmatprep.mubr.bf16.mxu0 0
    %862 = vmatmul.mubr.bf16.gmra.mrb[0].mxu0 %v280
    %v863 = vpop.f32.mrb[0].mxu0
    %v864 = vadd.f32 0.0, %v863
    %v865 = vpop.f32.mrb[0].mxu0
    %v866 = vpop.f32.mrb[0].mxu0
    %v867 = vadd.f32 0.0, %v866
    %v868 = vpop.f32.mrb[0].mxu0
    %869 = vmatprep.mubr.bf16.mxu0 0
    %870 = vmatmul.mubr.bf16.gmra.mrb[0].mxu0 %v281
    %v871 = vpop.f32.mrb[0].mxu0
    %v872 = vadd.f32 0.0, %v871
    %v873 = vpop.f32.mrb[0].mxu0
    %v874 = vpop.f32.mrb[0].mxu0
    %v875 = vadd.f32 0.0, %v874
    %v876 = vpop.f32.mrb[0].mxu0
    %877 = vmatprep.mubr.bf16.mxu0 0
    %878 = vmatmul.mubr.bf16.gmra.mrb[0].mxu0 %v282
    %v879 = vpop.f32.mrb[0].mxu0
    %v880 = vadd.f32 0.0, %v879
    %v881 = vpop.f32.mrb[0].mxu0
    %v882 = vpop.f32.mrb[0].mxu0
    %v883 = vadd.f32 0.0, %v882
    %v884 = vpop.f32.mrb[0].mxu0
    %885 = vdwg.mxu0
    %v886 = vmul.f32 %v142, %v824
    %v887 = vmul.f32 %v147, %v827
    %v888 = vmul.f32 %v152, %v832
    %v889 = vmul.f32 %v157, %v835
    %v890 = vmul.f32 %v162, %v840
    %v891 = vmul.f32 %v167, %v843
    %v892 = vmul.f32 %v172, %v848
    %v893 = vmul.f32 %v177, %v851
    %v894 = vmul.f32 %v182, %v856
    %v895 = vmul.f32 %v187, %v859
    %v896 = vmul.f32 %v192, %v864
    %v897 = vmul.f32 %v197, %v867
    %v898 = vmul.f32 %v202, %v872
    %v899 = vmul.f32 %v207, %v875
    %v900 = vmul.f32 %v212, %v880
    %v901 = vmul.f32 %v217, %v883
    %v902 = vld [vmem:[%s6] sm:$0x1]
    %v904 = vlaneseq
    %v905 = vshrl.u32 %v904, 7
    %v906 = vsub.s32 0, %v905
    %v907 = vrot.slane %v902, %v906
    %v909 = vadd.f32 %v886, %v907
    %v910 = vadd.f32 %v887, %v907
    %v911 = vadd.f32 %v888, %v907
    %v912 = vadd.f32 %v889, %v907
    %v913 = vadd.f32 %v890, %v907
    %v914 = vadd.f32 %v891, %v907
    %v915 = vadd.f32 %v892, %v907
    %v916 = vadd.f32 %v893, %v907
    %v917 = vadd.f32 %v894, %v907
    %v918 = vadd.f32 %v895, %v907
    %v919 = vadd.f32 %v896, %v907
    %v920 = vadd.f32 %v897, %v907
    %v921 = vadd.f32 %v898, %v907
    %v922 = vadd.f32 %v899, %v907
    %v923 = vadd.f32 %v900, %v907
    %v924 = vadd.f32 %v901, %v907
    %v925 = vmax.f32 %v909, 0.0
    %v926 = vmax.f32 %v910, 0.0
    %v927 = vmax.f32 %v911, 0.0
    %v928 = vmax.f32 %v912, 0.0
    %v929 = vmax.f32 %v913, 0.0
    %v930 = vmax.f32 %v914, 0.0
    %v931 = vmax.f32 %v915, 0.0
    %v932 = vmax.f32 %v916, 0.0
    %v933 = vmax.f32 %v917, 0.0
    %v934 = vmax.f32 %v918, 0.0
    %v935 = vmax.f32 %v919, 0.0
    %v936 = vmax.f32 %v920, 0.0
    %v937 = vmax.f32 %v921, 0.0
    %v938 = vmax.f32 %v922, 0.0
    %v939 = vmax.f32 %v923, 0.0
    %v940 = vmax.f32 %v924, 0.0
    %v941 = vpack.c.bf16 %v926, %v925
    %v942 = vpack.c.bf16 %v928, %v927
    %v943 = vpack.c.bf16 %v930, %v929
    %v944 = vpack.c.bf16 %v932, %v931
    %v945 = vpack.c.bf16 %v934, %v933
    %v946 = vpack.c.bf16 %v936, %v935
    %v947 = vpack.c.bf16 %v938, %v937
    %v948 = vpack.c.bf16 %v940, %v939
    %v949 = vld [vmem:[#allocation7] sm:$0xf]
    %v950 = vld [vmem:[#allocation7 + $0x4] sm:$0xf]
    %v951 = vld [vmem:[#allocation7 + $0x8] sm:$0xf]
    %v952 = vld [vmem:[#allocation7 + $0xc] sm:$0xf]
    %v953 = vld [vmem:[#allocation7 + $0x10] sm:$0xf]
    %v954 = vld [vmem:[#allocation7 + $0x14] sm:$0xf]
    %v955 = vld [vmem:[#allocation7 + $0x18] sm:$0xf]
    %v956 = vld [vmem:[#allocation7 + $0x1c] sm:$0xf]
    %v957 = vld [vmem:[#allocation7 + $0x20] sm:$0xf]
    %v958 = vld [vmem:[#allocation7 + $0x24] sm:$0xf]
    %v959 = vld [vmem:[#allocation7 + $0x28] sm:$0xf]
    %v960 = vld [vmem:[#allocation7 + $0x2c] sm:$0xf]
    %v961 = vld [vmem:[#allocation7 + $0x30] sm:$0xf]
    %v962 = vld [vmem:[#allocation7 + $0x34] sm:$0xf]
    %v963 = vld [vmem:[#allocation7 + $0x38] sm:$0xf]
    %v964 = vld [vmem:[#allocation7 + $0x3c] sm:$0xf]
    %v981 = vunpack.c.l.b16 %v949
    %v982 = vunpack.c.l.b16 %v950
    %v983 = vunpack.c.l.b16 %v951
    %v984 = vunpack.c.l.b16 %v952
    %v985 = vunpack.c.l.b16 %v953
    %v986 = vunpack.c.l.b16 %v954
    %v987 = vunpack.c.l.b16 %v955
    %v988 = vunpack.c.l.b16 %v956
    %v989 = vunpack.c.l.b16 %v957
    %v990 = vunpack.c.l.b16 %v958
    %v991 = vunpack.c.l.b16 %v959
    %v992 = vunpack.c.l.b16 %v960
    %v993 = vunpack.c.l.b16 %v961
    %v994 = vunpack.c.l.b16 %v962
    %v995 = vunpack.c.l.b16 %v963
    %v996 = vunpack.c.l.b16 %v964
    %v997 = vpack.c.b16 %v982, %v981
    %v998 = vpack.c.b16 %v984, %v983
    %v999 = vpack.c.b16 %v986, %v985
    %v1000 = vpack.c.b16 %v988, %v987
    %v1001 = vpack.c.b16 %v990, %v989
    %v1002 = vpack.c.b16 %v992, %v991
    %v1003 = vpack.c.b16 %v994, %v993
    %v1004 = vpack.c.b16 %v996, %v995
    %1013 = vmatprep.subr.bf16.mxu0 0
    %1014 = vmatpush1.bf16.msra.mxu0 %v997
    %1015 = vmatprep.subr.bf16.mxu0 0
    %1016 = vmatpush1.bf16.msra.mxu0 %v998
    %1017 = vmatprep.subr.bf16.mxu0 0
    %1018 = vmatpush1.bf16.msra.mxu0 %v999
    %1019 = vmatprep.subr.bf16.mxu0 0
    %1020 = vmatpush1.bf16.msra.mxu0 %v1000
    %1021 = vmatprep.subr.bf16.mxu0 0
    %1022 = vmatpush1.bf16.msra.mxu0 %v1001
    %1023 = vmatprep.subr.bf16.mxu0 0
    %1024 = vmatpush1.bf16.msra.mxu0 %v1002
    %1025 = vmatprep.subr.bf16.mxu0 0
    %1026 = vmatpush1.bf16.msra.mxu0 %v1003
    %1027 = vmatprep.subr.bf16.mxu0 0
    %1028 = vmatpush1.bf16.msra.mxu0 %v1004
    %1029 = vmatprep.subr.bf16.mxu0 0
    %1030 = vmatpush1.bf16.msra.mxu0 0
    %1031 = vmatprep.subr.bf16.mxu0 0
    %1032 = vmatpush1.bf16.msra.mxu0 0
    %1033 = vmatprep.subr.bf16.mxu0 0
    %1034 = vmatpush1.bf16.msra.mxu0 0
    %1035 = vmatprep.subr.bf16.mxu0 0
    %1036 = vmatpush1.bf16.msra.mxu0 0
    %1037 = vmatprep.subr.bf16.mxu0 0
    %1038 = vmatpush1.bf16.msra.mxu0 0
    %1039 = vmatprep.subr.bf16.mxu0 0
    %1040 = vmatpush1.bf16.msra.mxu0 0
    %1041 = vmatprep.subr.bf16.mxu0 0
    %1042 = vmatpush1.bf16.msra.mxu0 0
    %1043 = vmatprep.subr.bf16.mxu0 0
    %1044 = vmatpush1.bf16.msra.mxu0 0
    %1045 = vmatprep.mubr.bf16.mxu0 0
    %1046 = vmatmul.mubr.bf16.gmra.mrb[0].mxu0 %v941
    %v1047 = vpop.f32.mrb[0].mxu0
    %v1048 = vadd.f32 0.0, %v1047
    %v1049 = vpop.f32.mrb[0].mxu0
    %v1050 = vpop.f32.mrb[0].mxu0
    %v1051 = vadd.f32 0.0, %v1050
    %v1052 = vpop.f32.mrb[0].mxu0
    %1053 = vmatprep.mubr.bf16.mxu0 0
    %1054 = vmatmul.mubr.bf16.gmra.mrb[0].mxu0 %v942
    %v1055 = vpop.f32.mrb[0].mxu0
    %v1056 = vadd.f32 0.0, %v1055
    %v1057 = vpop.f32.mrb[0].mxu0
    %v1058 = vpop.f32.mrb[0].mxu0
    %v1059 = vadd.f32 0.0, %v1058
    %v1060 = vpop.f32.mrb[0].mxu0
    %1061 = vmatprep.mubr.bf16.mxu0 0
    %1062 = vmatmul.mubr.bf16.gmra.mrb[0].mxu0 %v943
    %v1063 = vpop.f32.mrb[0].mxu0
    %v1064 = vadd.f32 0.0, %v1063
    %v1065 = vpop.f32.mrb[0].mxu0
    %v1066 = vpop.f32.mrb[0].mxu0
    %v1067 = vadd.f32 0.0, %v1066
    %v1068 = vpop.f32.mrb[0].mxu0
    %1069 = vmatprep.mubr.bf16.mxu0 0
    %1070 = vmatmul.mubr.bf16.gmra.mrb[0].mxu0 %v944
    %v1071 = vpop.f32.mrb[0].mxu0
    %v1072 = vadd.f32 0.0, %v1071
    %v1073 = vpop.f32.mrb[0].mxu0
    %v1074 = vpop.f32.mrb[0].mxu0
    %v1075 = vadd.f32 0.0, %v1074
    %v1076 = vpop.f32.mrb[0].mxu0
    %1077 = vmatprep.mubr.bf16.mxu0 0
    %1078 = vmatmul.mubr.bf16.gmra.mrb[0].mxu0 %v945
    %v1079 = vpop.f32.mrb[0].mxu0
    %v1080 = vadd.f32 0.0, %v1079
    %v1081 = vpop.f32.mrb[0].mxu0
    %v1082 = vpop.f32.mrb[0].mxu0
    %v1083 = vadd.f32 0.0, %v1082
    %v1084 = vpop.f32.mrb[0].mxu0
    %1085 = vmatprep.mubr.bf16.mxu0 0
    %1086 = vmatmul.mubr.bf16.gmra.mrb[0].mxu0 %v946
    %v1087 = vpop.f32.mrb[0].mxu0
    %v1088 = vadd.f32 0.0, %v1087
    %v1089 = vpop.f32.mrb[0].mxu0
    %v1090 = vpop.f32.mrb[0].mxu0
    %v1091 = vadd.f32 0.0, %v1090
    %v1092 = vpop.f32.mrb[0].mxu0
    %1093 = vmatprep.mubr.bf16.mxu0 0
    %1094 = vmatmul.mubr.bf16.gmra.mrb[0].mxu0 %v947
    %v1095 = vpop.f32.mrb[0].mxu0
    %v1096 = vadd.f32 0.0, %v1095
    %v1097 = vpop.f32.mrb[0].mxu0
    %v1098 = vpop.f32.mrb[0].mxu0
    %v1099 = vadd.f32 0.0, %v1098
    %v1100 = vpop.f32.mrb[0].mxu0
    %1101 = vmatprep.mubr.bf16.mxu0 0
    %1102 = vmatmul.mubr.bf16.gmra.mrb[0].mxu0 %v948
    %v1103 = vpop.f32.mrb[0].mxu0
    %v1104 = vadd.f32 0.0, %v1103
    %v1105 = vpop.f32.mrb[0].mxu0
    %v1106 = vpop.f32.mrb[0].mxu0
    %v1107 = vadd.f32 0.0, %v1106
    %v1108 = vpop.f32.mrb[0].mxu0
    %1109 = vdwg.mxu0
    %v1110 = vmul.f32 %v142, %v1048
    %v1111 = vmul.f32 %v147, %v1051
    %v1112 = vmul.f32 %v152, %v1056
    %v1113 = vmul.f32 %v157, %v1059
    %v1114 = vmul.f32 %v162, %v1064
    %v1115 = vmul.f32 %v167, %v1067
    %v1116 = vmul.f32 %v172, %v1072
    %v1117 = vmul.f32 %v177, %v1075
    %v1118 = vmul.f32 %v182, %v1080
    %v1119 = vmul.f32 %v187, %v1083
    %v1120 = vmul.f32 %v192, %v1088
    %v1121 = vmul.f32 %v197, %v1091
    %v1122 = vmul.f32 %v202, %v1096
    %v1123 = vmul.f32 %v207, %v1099
    %v1124 = vmul.f32 %v212, %v1104
    %v1125 = vmul.f32 %v217, %v1107
    %v1126 = vpack.c.bf16 %v1111, %v1110
    %v1127 = vpack.c.bf16 %v1113, %v1112
    %v1128 = vpack.c.bf16 %v1115, %v1114
    %v1129 = vpack.c.bf16 %v1117, %v1116
    %v1130 = vpack.c.bf16 %v1119, %v1118
    %v1131 = vpack.c.bf16 %v1121, %v1120
    %v1132 = vpack.c.bf16 %v1123, %v1122
    %v1133 = vpack.c.bf16 %v1125, %v1124
    %1134 = vmatprep.subr.bf16.mxu0 0
    %1135 = vmatpush1.bf16.msra.mxu0 %v1126
    %1136 = vmatprep.subr.bf16.mxu0 0
    %1137 = vmatpush1.bf16.msra.mxu0 %v1127
    %1138 = vmatprep.subr.bf16.mxu0 0
    %1139 = vmatpush1.bf16.msra.mxu0 %v1128
    %1140 = vmatprep.subr.bf16.mxu0 0
    %1141 = vmatpush1.bf16.msra.mxu0 %v1129
    %1142 = vmatprep.subr.bf16.mxu0 0
    %1143 = vmatpush1.bf16.msra.mxu0 %v1130
    %1144 = vmatprep.subr.bf16.mxu0 0
    %1145 = vmatpush1.bf16.msra.mxu0 %v1131
    %1146 = vmatprep.subr.bf16.mxu0 0
    %1147 = vmatpush1.bf16.msra.mxu0 %v1132
    %1148 = vmatprep.subr.bf16.mxu0 0
    %1149 = vmatpush1.bf16.msra.mxu0 %v1133
    %1150 = vmatprep.subr.bf16.mxu0 0
    %1151 = vmatpush1.bf16.msra.mxu0 0
    %1152 = vmatprep.subr.bf16.mxu0 0
    %1153 = vmatpush1.bf16.msra.mxu0 0
    %1154 = vmatprep.subr.bf16.mxu0 0
    %1155 = vmatpush1.bf16.msra.mxu0 0
    %1156 = vmatprep.subr.bf16.mxu0 0
    %1157 = vmatpush1.bf16.msra.mxu0 0
    %1158 = vmatprep.subr.bf16.mxu0 0
    %1159 = vmatpush1.bf16.msra.mxu0 0
    %1160 = vmatprep.subr.bf16.mxu0 0
    %1161 = vmatpush1.bf16.msra.mxu0 0
    %1162 = vmatprep.subr.bf16.mxu0 0
    %1163 = vmatpush1.bf16.msra.mxu0 0
    %1164 = vmatprep.subr.bf16.mxu0 0
    %1165 = vmatpush1.bf16.msra.mxu0 0
    %1166 = vmatprep.mubr.bf16.mxu0 0
    %1167 = vmatmul.mubr.bf16.gmra.mrb[0].mxu0 %v275
    %v1168 = vpop.f32.mrb[0].mxu0
    %v1169 = vadd.f32 0.0, %v1168
    %v1170 = vpop.f32.mrb[0].mxu0
    %v1171 = vpop.f32.mrb[0].mxu0
    %v1172 = vadd.f32 0.0, %v1171
    %v1173 = vpop.f32.mrb[0].mxu0
    %1174 = vmatprep.mubr.bf16.mxu0 0
    %1175 = vmatmul.mubr.bf16.gmra.mrb[0].mxu0 %v276
    %v1176 = vpop.f32.mrb[0].mxu0
    %v1177 = vadd.f32 0.0, %v1176
    %v1178 = vpop.f32.mrb[0].mxu0
    %v1179 = vpop.f32.mrb[0].mxu0
    %v1180 = vadd.f32 0.0, %v1179
    %v1181 = vpop.f32.mrb[0].mxu0
    %1182 = vmatprep.mubr.bf16.mxu0 0
    %1183 = vmatmul.mubr.bf16.gmra.mrb[0].mxu0 %v277
    %v1184 = vpop.f32.mrb[0].mxu0
    %v1185 = vadd.f32 0.0, %v1184
    %v1186 = vpop.f32.mrb[0].mxu0
    %v1187 = vpop.f32.mrb[0].mxu0
    %v1188 = vadd.f32 0.0, %v1187
    %v1189 = vpop.f32.mrb[0].mxu0
    %1190 = vmatprep.mubr.bf16.mxu0 0
    %1191 = vmatmul.mubr.bf16.gmra.mrb[0].mxu0 %v278
    %v1192 = vpop.f32.mrb[0].mxu0
    %v1193 = vadd.f32 0.0, %v1192
    %v1194 = vpop.f32.mrb[0].mxu0
    %v1195 = vpop.f32.mrb[0].mxu0
    %v1196 = vadd.f32 0.0, %v1195
    %v1197 = vpop.f32.mrb[0].mxu0
    %1198 = vmatprep.mubr.bf16.mxu0 0
    %1199 = vmatmul.mubr.bf16.gmra.mrb[0].mxu0 %v279
    %v1200 = vpop.f32.mrb[0].mxu0
    %v1201 = vadd.f32 0.0, %v1200
    %v1202 = vpop.f32.mrb[0].mxu0
    %v1203 = vpop.f32.mrb[0].mxu0
    %v1204 = vadd.f32 0.0, %v1203
    %v1205 = vpop.f32.mrb[0].mxu0
    %1206 = vmatprep.mubr.bf16.mxu0 0
    %1207 = vmatmul.mubr.bf16.gmra.mrb[0].mxu0 %v280
    %v1208 = vpop.f32.mrb[0].mxu0
    %v1209 = vadd.f32 0.0, %v1208
    %v1210 = vpop.f32.mrb[0].mxu0
    %v1211 = vpop.f32.mrb[0].mxu0
    %v1212 = vadd.f32 0.0, %v1211
    %v1213 = vpop.f32.mrb[0].mxu0
    %1214 = vmatprep.mubr.bf16.mxu0 0
    %1215 = vmatmul.mubr.bf16.gmra.mrb[0].mxu0 %v281
    %v1216 = vpop.f32.mrb[0].mxu0
    %v1217 = vadd.f32 0.0, %v1216
    %v1218 = vpop.f32.mrb[0].mxu0
    %v1219 = vpop.f32.mrb[0].mxu0
    %v1220 = vadd.f32 0.0, %v1219
    %v1221 = vpop.f32.mrb[0].mxu0
    %1222 = vmatprep.mubr.bf16.mxu0 0
    %1223 = vmatmul.mubr.bf16.gmra.mrb[0].mxu0 %v282
    %v1224 = vpop.f32.mrb[0].mxu0
    %v1225 = vadd.f32 0.0, %v1224
    %v1226 = vpop.f32.mrb[0].mxu0
    %v1227 = vpop.f32.mrb[0].mxu0
    %v1228 = vadd.f32 0.0, %v1227
    %v1229 = vpop.f32.mrb[0].mxu0
    %1230 = vdwg.mxu0
    %v1231 = vmul.f32 %v142, %v1169
    %v1232 = vmul.f32 %v147, %v1172
    %v1233 = vmul.f32 %v152, %v1177
    %v1234 = vmul.f32 %v157, %v1180
    %v1235 = vmul.f32 %v162, %v1185
    %v1236 = vmul.f32 %v167, %v1188
    %v1237 = vmul.f32 %v172, %v1193
    %v1238 = vmul.f32 %v177, %v1196
    %v1239 = vmul.f32 %v182, %v1201
    %v1240 = vmul.f32 %v187, %v1204
    %v1241 = vmul.f32 %v192, %v1209
    %v1242 = vmul.f32 %v197, %v1212
    %v1243 = vmul.f32 %v202, %v1217
    %v1244 = vmul.f32 %v207, %v1220
    %v1245 = vmul.f32 %v212, %v1225
    %v1246 = vmul.f32 %v217, %v1228
    %v1247 = vld [vmem:[%s8] sm:$0x1]
    %v1249 = vlaneseq
    %v1250 = vshrl.u32 %v1249, 7
    %v1251 = vsub.s32 0, %v1250
    %v1252 = vrot.slane %v1247, %v1251
    %v1254 = vadd.f32 %v1231, %v1252
    %v1255 = vadd.f32 %v1232, %v1252
    %v1256 = vadd.f32 %v1233, %v1252
    %v1257 = vadd.f32 %v1234, %v1252
    %v1258 = vadd.f32 %v1235, %v1252
    %v1259 = vadd.f32 %v1236, %v1252
    %v1260 = vadd.f32 %v1237, %v1252
    %v1261 = vadd.f32 %v1238, %v1252
    %v1262 = vadd.f32 %v1239, %v1252
    %v1263 = vadd.f32 %v1240, %v1252
    %v1264 = vadd.f32 %v1241, %v1252
    %v1265 = vadd.f32 %v1242, %v1252
    %v1266 = vadd.f32 %v1243, %v1252
    %v1267 = vadd.f32 %v1244, %v1252
    %v1268 = vadd.f32 %v1245, %v1252
    %v1269 = vadd.f32 %v1246, %v1252
    %1270 = vst [vmem:[#allocation8] sm:$0xff] %v1254
    %1271 = vst [vmem:[#allocation8 + $0x8] sm:$0xff] %v1255
    %1272 = vst [vmem:[#allocation8 + $0x10] sm:$0xff] %v1256
    %1273 = vst [vmem:[#allocation8 + $0x18] sm:$0xff] %v1257
    %1274 = vst [vmem:[#allocation8 + $0x20] sm:$0xff] %v1258
    %1275 = vst [vmem:[#allocation8 + $0x28] sm:$0xff] %v1259
    %1276 = vst [vmem:[#allocation8 + $0x30] sm:$0xff] %v1260
    %1277 = vst [vmem:[#allocation8 + $0x38] sm:$0xff] %v1261
    %1278 = vst [vmem:[#allocation8 + $0x40] sm:$0xff] %v1262
    %1279 = vst [vmem:[#allocation8 + $0x48] sm:$0xff] %v1263
    %1280 = vst [vmem:[#allocation8 + $0x50] sm:$0xff] %v1264
    %1281 = vst [vmem:[#allocation8 + $0x58] sm:$0xff] %v1265
    %1282 = vst [vmem:[#allocation8 + $0x60] sm:$0xff] %v1266
    %1283 = vst [vmem:[#allocation8 + $0x68] sm:$0xff] %v1267
    %1284 = vst [vmem:[#allocation8 + $0x70] sm:$0xff] %v1268
    %1285 = vst [vmem:[#allocation8 + $0x78] sm:$0xff] %v1269
    // Predicated region
    $region50: #{tpu_custom_call.1} parent=1 // pred_check
      _
    $region51: #{tpu_custom_call.1} parent=1 // pred_check_branch
      %1287 = sbr.rel (0) target = $region53
    $region52: #{tpu_custom_call.1} parent=1 // pred_region
      %s1289 = ssub.s32 2048, 2048
      %1290 = vsyncadd [#allocation4], %s1289
      %s1291 = sshll.u32 [#allocation8], 4
      %s1292 = int_to_ptr.vmem [resolvable:$true] %s1291
      %1297 = dma.vmem_to_hbm [thread:$0]  %s1292, 2048, %s9, [#allocation4], 128, 128, 8
    $region53: #{tpu_custom_call.1} parent=1 // pred_fallthru
      _
    // Predicated region
    $region54: #{tpu_custom_call.1} parent=1 // pred_check
      _
    $region55: #{tpu_custom_call.1} parent=1 // pred_check_branch
      %1299 = sbr.rel (0) target = $region57
    $region56: #{tpu_custom_call.1} parent=1 // pred_region
      %1300 = dma.done [#allocation4], 2048
    $region57: #{tpu_custom_call.1} parent=1 // pred_fallthru
      _
    %1301 = vsyncpa [#allocation3], 1
    %1302 = vsyncpa [#allocation6], 1
    %1303 = vsyncpa [#allocation4], 1

</llo_original>
